<compile_context>
chip_gen: v5e
topology: v5e:2x2
jax: 0.10.0
libtpu: 0.0.40
codegen_flags: <defaults>
</compile_context>

<pallas_src>
import functools

import jax
import jax.numpy as jnp
from jax.experimental import pallas as pl
from jax.experimental.pallas import tpu as pltpu

_SUBLANE = 8


def _round_up(x, m):
    return ((x + m - 1) // m) * m


def ppo_actor_kernel(obs_ref, w1_ref, b1_ref, w2_ref, b2_ref, w3_ref, b3_ref,
                     mu_ref):
    """Fused 3-layer MLP trunk + tanh head for one batch tile (all in VMEM).

    Dots run with bf16 operands (native MXU input on v5e/v6e/v7x) and f32
    accumulation; bias-add / ReLU / tanh stay in f32.
    """
    x = obs_ref[...].astype(jnp.bfloat16)

    # Hidden layer 1: Linear + ReLU
    h1 = jnp.dot(x, w1_ref[...], preferred_element_type=jnp.float32) + b1_ref[...]
    h1 = jnp.maximum(h1, 0.0).astype(jnp.bfloat16)

    # Hidden layer 2: Linear + ReLU
    h2 = jnp.dot(h1, w2_ref[...], preferred_element_type=jnp.float32) + b2_ref[...]
    h2 = jnp.maximum(h2, 0.0).astype(jnp.bfloat16)

    # Output head: Linear -> tanh (PPOActor.forward applies tanh to mu)
    mu = jnp.dot(h2, w3_ref[...], preferred_element_type=jnp.float32) + b3_ref[...]
    mu_ref[...] = jnp.tanh(mu).astype(mu_ref.dtype)


@functools.partial(jax.jit, static_argnames=("tile_b",))
def _ppo_actor_forward_jit(obs, params, *, tile_b):
    w1, b1, w2, b2, w3, b3, std = params
    B, obs_dim = obs.shape
    hidden = w1.shape[1]
    num_out = w3.shape[1]

    # Batch tile: forced multiple of 8 sublanes, never larger than needed.
    tb = min(int(tile_b), _round_up(B, _SUBLANE))
    tb = max(_SUBLANE, (tb // _SUBLANE) * _SUBLANE)
    b_p = _round_up(B, tb)
    grid = (b_p // tb,)

    # Only the batch dim ever needs padding (and only for ragged B).
    obs_in = obs if b_p == B else jnp.pad(obs, ((0, b_p - B), (0, 0)))

    const_map = lambda i: (0, 0)  # weights/biases stay resident across the grid
    in_specs = [
        pl.BlockSpec((tb, obs_dim), lambda i: (i, 0)),   # obs: tiled over batch
        pl.BlockSpec((obs_dim, hidden), const_map),      # w1 (bf16)
        pl.BlockSpec((1, hidden), const_map),            # b1 (f32)
        pl.BlockSpec((hidden, hidden), const_map),       # w2 (bf16)
        pl.BlockSpec((1, hidden), const_map),            # b2 (f32)
        pl.BlockSpec((hidden, num_out), const_map),      # w3 (bf16)
        pl.BlockSpec((1, num_out), const_map),           # b3 (f32)
    ]
    out_spec = pl.BlockSpec((tb, num_out), lambda i: (i, 0))

    # Advisory cost estimate on REAL (unpadded) dims.
    flops = 2 * B * (obs_dim * hidden + hidden * hidden + hidden * num_out)
    weight_bytes = 2 * (obs_dim * hidden + hidden * hidden + hidden * num_out) \
        + 4 * (2 * hidden + num_out)
    bytes_accessed = 4 * B * (obs_dim + num_out) + weight_bytes
    transcendentals = B * num_out  # tanh

    mu_full = pl.pallas_call(
        ppo_actor_kernel,
        grid=grid,
        out_shape=jax.ShapeDtypeStruct((b_p, num_out), jnp.float32),
        in_specs=in_specs,
        out_specs=out_spec,
        compiler_params=pltpu.CompilerParams(
            dimension_semantics=("parallel",),
        ),
        cost_estimate=pl.CostEstimate(
            flops=flops,
            transcendentals=transcendentals,
            bytes_accessed=bytes_accessed,
        ),
    )(obs_in, w1, b1, w2, b2, w3, b3)

    mu = mu_full if b_p == B else mu_full[:B]
    # std is a frozen per-action parameter (exp hoisted to init); Normal(mu, std)
    # broadcasts the (1, num_out) std against mu, exactly like torch.
    return mu, std


def _auto_tile_b(batch):
    """One batch tile per TensorCore: 1 TC on v5e/v6e, 2 TCs on v7x."""
    try:
        kind = jax.devices()[0].device_kind.lower()
    except Exception:  # pragma: no cover - defensive
        kind = ""
    n_tc = 2 if "v7" in kind else 1
    tb = _round_up(pl.cdiv(batch, n_tc), _SUBLANE)
    return max(_SUBLANE, min(tb, 1024))


def ppo_actor_forward(obs, params, tile_b=None):
    """Returns (mu, std) parameterizing the Normal distribution."""
    if tile_b is None:
        tile_b = _auto_tile_b(obs.shape[0])
    return _ppo_actor_forward_jit(obs, params, tile_b=tile_b)


def init_params(key, obs_dim, hidden, num_out, actor_logstd):
    """Synthetic parameter init (nn.Linear shapes, transposed). Weights are
    pre-cast to bf16 (MXU-native); biases stay f32; std = exp(logstd) is
    precomputed once since logstd is frozen (requires_grad=False)."""
    k1, k2, k3 = jax.random.split(key, 3)
    scale = 0.1
    w1 = (scale * jax.random.normal(k1, (obs_dim, hidden), jnp.float32)).astype(jnp.bfloat16)
    b1 = jnp.zeros((1, hidden), jnp.float32)
    w2 = (scale * jax.random.normal(k2, (hidden, hidden), jnp.float32)).astype(jnp.bfloat16)
    b2 = jnp.zeros((1, hidden), jnp.float32)
    w3 = (scale * jax.random.normal(k3, (hidden, num_out), jnp.float32)).astype(jnp.bfloat16)
    b3 = jnp.zeros((1, num_out), jnp.float32)
    # self.logstd = nn.Parameter(torch.ones(num_out) * config.actor_logstd)
    logstd = jnp.ones((1, num_out), jnp.float32) * actor_logstd
    std = jnp.exp(logstd)
    return (w1, b1, w2, b2, w3, b3, std)


def reference_forward(obs, params):
    """Pure-JAX reference using the same bf16-operand / f32-accumulate dots."""
    w1, b1, w2, b2, w3, b3, std = params

    def dot(a, w):
        return jnp.dot(a.astype(jnp.bfloat16), w,
                       preferred_element_type=jnp.float32)

    h1 = jnp.maximum(dot(obs, w1) + b1, 0.0)
    h2 = jnp.maximum(dot(h1, w2) + b2, 0.0)
    mu = jnp.tanh(dot(h2, w3) + b3)
    return mu, std


if __name__ == "__main__":
    # Small shapes consistent with the module's forward semantics.
    B, OBS_DIM, HIDDEN, NUM_OUT = 200, 24, 48, 8
    ACTOR_LOGSTD = -2.9  # config.actor_logstd

    key = jax.random.PRNGKey(0)
    k_obs, k_params = jax.random.split(key)
    obs = jax.random.normal(k_obs, (B, OBS_DIM), jnp.float32)
    params = init_params(k_params, OBS_DIM, HIDDEN, NUM_OUT, ACTOR_LOGSTD)

    mu, std = ppo_actor_forward(obs, params)
    jax.block_until_ready((mu, std))

    mu_ref, std_ref = reference_forward(obs, params)
    assert mu.shape == (B, NUM_OUT) and std.shape == (1, NUM_OUT)
    assert bool(jnp.allclose(mu, mu_ref, atol=1e-5, rtol=1e-5)), "mu mismatch"
    assert bool(jnp.allclose(std, std_ref, atol=1e-6, rtol=1e-6)), "std mismatch"

    # Also exercise the ragged-batch / multi-tile path (batch padding + slice).
    mu2, _ = ppo_actor_forward(obs, params, tile_b=64)
    jax.block_until_ready(mu2)
    assert mu2.shape == (B, NUM_OUT)
    assert bool(jnp.allclose(mu2, mu_ref, atol=1e-5, rtol=1e-5)), "tiled mu mismatch"

    # TODO(synk): torch.distributions.Normal object itself (sampling / log_prob)
    # is host-side glue; the kernel returns its (mu, std) parameterization.
    print("KERNEL_OK")
</pallas_src>

<mosaic_0001>
module attributes {stable_mosaic.version = 11 : i64} {
  func.func @ppo_actor_kernel(%arg0: i32, %arg1: memref<200x24xf32, #tpu.memory_space<vmem>>, %arg2: memref<24x48xbf16, #tpu.memory_space<vmem>>, %arg3: memref<1x48xf32, #tpu.memory_space<vmem>>, %arg4: memref<48x48xbf16, #tpu.memory_space<vmem>>, %arg5: memref<1x48xf32, #tpu.memory_space<vmem>>, %arg6: memref<48x8xbf16, #tpu.memory_space<vmem>>, %arg7: memref<1x8xf32, #tpu.memory_space<vmem>>, %arg8: memref<200x8xf32, #tpu.memory_space<vmem>>) attributes {dimension_semantics = [#tpu.dimension_semantics<parallel>], iteration_bounds = array<i64: 1>, scalar_prefetch = 0 : i64, scratch_operands = 0 : i64, tpu.core_type = #tpu.core_type<tc>, window_params = [{transform_indices = @transform_0, window_bounds = array<i64: 200, 24>}, {pipeline_mode = #tpu.pipeline_mode<synchronous>, transform_indices = @transform_1, window_bounds = array<i64: 24, 48>}, {pipeline_mode = #tpu.pipeline_mode<synchronous>, transform_indices = @transform_2, window_bounds = array<i64: 1, 48>}, {pipeline_mode = #tpu.pipeline_mode<synchronous>, transform_indices = @transform_3, window_bounds = array<i64: 48, 48>}, {pipeline_mode = #tpu.pipeline_mode<synchronous>, transform_indices = @transform_4, window_bounds = array<i64: 1, 48>}, {pipeline_mode = #tpu.pipeline_mode<synchronous>, transform_indices = @transform_5, window_bounds = array<i64: 48, 8>}, {pipeline_mode = #tpu.pipeline_mode<synchronous>, transform_indices = @transform_6, window_bounds = array<i64: 1, 8>}, {transform_indices = @transform_7, window_bounds = array<i64: 200, 8>}]} {
    %c0 = arith.constant 0 : index
    %c0_0 = arith.constant 0 : index
    %0 = vector.load %arg1[%c0, %c0_0] : memref<200x24xf32, #tpu.memory_space<vmem>>, vector<200x24xf32>
    %1 = arith.truncf %0 : vector<200x24xf32> to vector<200x24xbf16>
    %c0_1 = arith.constant 0 : index
    %c0_2 = arith.constant 0 : index
    %2 = vector.load %arg2[%c0_1, %c0_2] : memref<24x48xbf16, #tpu.memory_space<vmem>>, vector<24x48xbf16>
    %cst = arith.constant dense<0.000000e+00> : vector<200x48xf32>
    %3 = tpu.matmul %1, %2, %cst {dimension_numbers = #tpu.dot_dimension_numbers<[1], [0], [0], [1], [0, 0, 1, 1], [], []>} : vector<200x24xbf16>, vector<24x48xbf16>, vector<200x48xf32> -> vector<200x48xf32>
    %c0_3 = arith.constant 0 : index
    %c0_4 = arith.constant 0 : index
    %4 = vector.load %arg3[%c0_3, %c0_4] : memref<1x48xf32, #tpu.memory_space<vmem>>, vector<1x48xf32>
    %5 = vector.broadcast %4 : vector<1x48xf32> to vector<200x48xf32>
    %6 = arith.addf %3, %5 : vector<200x48xf32>
    %cst_5 = arith.constant 0.000000e+00 : f32
    %7 = vector.broadcast %cst_5 : f32 to vector<200x48xf32>
    %8 = arith.maximumf %6, %7 : vector<200x48xf32>
    %9 = arith.truncf %8 : vector<200x48xf32> to vector<200x48xbf16>
    %c0_6 = arith.constant 0 : index
    %c0_7 = arith.constant 0 : index
    %10 = vector.load %arg4[%c0_6, %c0_7] : memref<48x48xbf16, #tpu.memory_space<vmem>>, vector<48x48xbf16>
    %cst_8 = arith.constant dense<0.000000e+00> : vector<200x48xf32>
    %11 = tpu.matmul %9, %10, %cst_8 {dimension_numbers = #tpu.dot_dimension_numbers<[1], [0], [0], [1], [0, 0, 1, 1], [], []>} : vector<200x48xbf16>, vector<48x48xbf16>, vector<200x48xf32> -> vector<200x48xf32>
    %c0_9 = arith.constant 0 : index
    %c0_10 = arith.constant 0 : index
    %12 = vector.load %arg5[%c0_9, %c0_10] : memref<1x48xf32, #tpu.memory_space<vmem>>, vector<1x48xf32>
    %13 = vector.broadcast %12 : vector<1x48xf32> to vector<200x48xf32>
    %14 = arith.addf %11, %13 : vector<200x48xf32>
    %cst_11 = arith.constant 0.000000e+00 : f32
    %15 = vector.broadcast %cst_11 : f32 to vector<200x48xf32>
    %16 = arith.maximumf %14, %15 : vector<200x48xf32>
    %17 = arith.truncf %16 : vector<200x48xf32> to vector<200x48xbf16>
    %c0_12 = arith.constant 0 : index
    %c0_13 = arith.constant 0 : index
    %18 = vector.load %arg6[%c0_12, %c0_13] : memref<48x8xbf16, #tpu.memory_space<vmem>>, vector<48x8xbf16>
    %cst_14 = arith.constant dense<0.000000e+00> : vector<200x8xf32>
    %19 = tpu.matmul %17, %18, %cst_14 {dimension_numbers = #tpu.dot_dimension_numbers<[1], [0], [0], [1], [0, 0, 1, 1], [], []>} : vector<200x48xbf16>, vector<48x8xbf16>, vector<200x8xf32> -> vector<200x8xf32>
    %c0_15 = arith.constant 0 : index
    %c0_16 = arith.constant 0 : index
    %20 = vector.load %arg7[%c0_15, %c0_16] : memref<1x8xf32, #tpu.memory_space<vmem>>, vector<1x8xf32>
    %21 = vector.broadcast %20 : vector<1x8xf32> to vector<200x8xf32>
    %22 = arith.addf %19, %21 : vector<200x8xf32>
    %23 = math.tanh %22 : vector<200x8xf32>
    %c0_17 = arith.constant 0 : index
    %c0_18 = arith.constant 0 : index
    %24 = vector.load %arg8[%c0_17, %c0_18] : memref<200x8xf32, #tpu.memory_space<vmem>>, vector<200x8xf32>
    tpu.vector_store %arg8[%c0_17, %c0_18], %23 {strides = array<i32>} : memref<200x8xf32, #tpu.memory_space<vmem>>, vector<200x8xf32>,
    return
  }
  func.func @transform_0(%arg0: i32) -> (i32, i32) {
    %c0_i32 = arith.constant 0 : i32
    %c0_i32_0 = arith.constant 0 : i32
    return %arg0, %c0_i32 : i32, i32
  }
  func.func @transform_1(%arg0: i32) -> (i32, i32) {
    %c0_i32 = arith.constant 0 : i32
    %c0_i32_0 = arith.constant 0 : i32
    %c0_i32_1 = arith.constant 0 : i32
    return %c0_i32, %c0_i32_0 : i32, i32
  }
  func.func @transform_2(%arg0: i32) -> (i32, i32) {
    %c0_i32 = arith.constant 0 : i32
    %c0_i32_0 = arith.constant 0 : i32
    %c0_i32_1 = arith.constant 0 : i32
    return %c0_i32, %c0_i32_0 : i32, i32
  }
  func.func @transform_3(%arg0: i32) -> (i32, i32) {
    %c0_i32 = arith.constant 0 : i32
    %c0_i32_0 = arith.constant 0 : i32
    %c0_i32_1 = arith.constant 0 : i32
    return %c0_i32, %c0_i32_0 : i32, i32
  }
  func.func @transform_4(%arg0: i32) -> (i32, i32) {
    %c0_i32 = arith.constant 0 : i32
    %c0_i32_0 = arith.constant 0 : i32
    %c0_i32_1 = arith.constant 0 : i32
    return %c0_i32, %c0_i32_0 : i32, i32
  }
  func.func @transform_5(%arg0: i32) -> (i32, i32) {
    %c0_i32 = arith.constant 0 : i32
    %c0_i32_0 = arith.constant 0 : i32
    %c0_i32_1 = arith.constant 0 : i32
    return %c0_i32, %c0_i32_0 : i32, i32
  }
  func.func @transform_6(%arg0: i32) -> (i32, i32) {
    %c0_i32 = arith.constant 0 : i32
    %c0_i32_0 = arith.constant 0 : i32
    %c0_i32_1 = arith.constant 0 : i32
    return %c0_i32, %c0_i32_0 : i32, i32
  }
  func.func @transform_7(%arg0: i32) -> (i32, i32) {
    %c0_i32 = arith.constant 0 : i32
    %c0_i32_0 = arith.constant 0 : i32
    return %arg0, %c0_i32 : i32, i32
  }
}

</mosaic_0001>

<llo_original>
// kernel: _ppo_actor_forward_jit.1
$region0: #{_ppo_actor_forward_jit.1}
  #allocation0 [shape = 'u32[]', space=smem, size = 0x4, offset = 0x4, fixed_abs, tag = 'smem constant byte address 0x4 - core index']
  #allocation1 [shape = 'u32[72,128]{1,0:T(1,128)}', space=vmem, size = 0x9000, scoped, tag = 'internal scratch']
  %s0 = inlined_call_operand.vmem [shape: f32[200,24], index: 0, kind: input, shape index: {}]
  %s1 = inlined_call_operand.vmem [shape: bf16[24,48], index: 1, kind: input, shape index: {}]
  %s2 = inlined_call_operand.vmem [shape: f32[1,48], index: 2, kind: input, shape index: {}]
  %s3 = inlined_call_operand.vmem [shape: bf16[48,48], index: 3, kind: input, shape index: {}]
  %s4 = inlined_call_operand.vmem [shape: f32[1,48], index: 4, kind: input, shape index: {}]
  %s5 = inlined_call_operand.vmem [shape: bf16[48,8], index: 5, kind: input, shape index: {}]
  %s6 = inlined_call_operand.vmem [shape: f32[1,8], index: 6, kind: input, shape index: {}]
  %s7 = inlined_call_operand.vmem [shape: f32[200,8], index: 7, kind: output, shape index: {}]
  %s8 = sld [smem:[#allocation0]]
  $region38: #{_ppo_actor_forward_jit.1} parent=0
    _
  %s10 = ssub.s32 1, %s8
  %s11 = scalar_select 0, %s10, %s8
  // Predicated region
  $region2: #{_ppo_actor_forward_jit.1} parent=0 // pred_check
    _
  $region3: #{_ppo_actor_forward_jit.1} parent=0 // pred_check_branch
    %13 = sbr.rel (0) target = $region5
  $region4: #{_ppo_actor_forward_jit.1} parent=0 // pred_region
    _
  $region5: #{_ppo_actor_forward_jit.1} parent=0 // pred_fallthru
    _
  // Predicated region
  $region6: #{_ppo_actor_forward_jit.1} parent=0 // pred_check
    _
  $region7: #{_ppo_actor_forward_jit.1} parent=0 // pred_check_branch
    %15 = sbr.rel (0) target = $region9
  $region8: #{_ppo_actor_forward_jit.1} parent=0 // pred_region
    _
  $region9: #{_ppo_actor_forward_jit.1} parent=0 // pred_fallthru
    _
  // Predicated region
  $region10: #{_ppo_actor_forward_jit.1} parent=0 // pred_check
    _
  $region11: #{_ppo_actor_forward_jit.1} parent=0 // pred_check_branch
    %17 = sbr.rel (0) target = $region13
  $region12: #{_ppo_actor_forward_jit.1} parent=0 // pred_region
    _
  $region13: #{_ppo_actor_forward_jit.1} parent=0 // pred_fallthru
    _
  // Predicated region
  $region14: #{_ppo_actor_forward_jit.1} parent=0 // pred_check
    _
  $region15: #{_ppo_actor_forward_jit.1} parent=0 // pred_check_branch
    %19 = sbr.rel (0) target = $region17
  $region16: #{_ppo_actor_forward_jit.1} parent=0 // pred_region
    _
  $region17: #{_ppo_actor_forward_jit.1} parent=0 // pred_fallthru
    _
  // Predicated region
  $region18: #{_ppo_actor_forward_jit.1} parent=0 // pred_check
    _
  $region19: #{_ppo_actor_forward_jit.1} parent=0 // pred_check_branch
    %21 = sbr.rel (0) target = $region21
  $region20: #{_ppo_actor_forward_jit.1} parent=0 // pred_region
    _
  $region21: #{_ppo_actor_forward_jit.1} parent=0 // pred_fallthru
    _
  // Predicated region
  $region22: #{_ppo_actor_forward_jit.1} parent=0 // pred_check
    _
  $region23: #{_ppo_actor_forward_jit.1} parent=0 // pred_check_branch
    %23 = sbr.rel (0) target = $region25
  $region24: #{_ppo_actor_forward_jit.1} parent=0 // pred_region
    _
  $region25: #{_ppo_actor_forward_jit.1} parent=0 // pred_fallthru
    _
  // Predicated region
  $region26: #{_ppo_actor_forward_jit.1} parent=0 // pred_check
    _
  $region27: #{_ppo_actor_forward_jit.1} parent=0 // pred_check_branch
    %25 = sbr.rel (0) target = $region29
  $region28: #{_ppo_actor_forward_jit.1} parent=0 // pred_region
    _
  $region29: #{_ppo_actor_forward_jit.1} parent=0 // pred_fallthru
    _
  %v27 = vld [vmem:[%s0] sm:$0xff]
  %v28 = vld [vmem:[%s0 + $0x8] sm:$0xff]
  %v29 = vld [vmem:[%s0 + $0x10] sm:$0xff]
  %v30 = vld [vmem:[%s0 + $0x18] sm:$0xff]
  %v31 = vld [vmem:[%s0 + $0x20] sm:$0xff]
  %v32 = vld [vmem:[%s0 + $0x28] sm:$0xff]
  %v33 = vld [vmem:[%s0 + $0x30] sm:$0xff]
  %v34 = vld [vmem:[%s0 + $0x38] sm:$0xff]
  %v35 = vld [vmem:[%s0 + $0x40] sm:$0xff]
  %v36 = vld [vmem:[%s0 + $0x48] sm:$0xff]
  %v37 = vld [vmem:[%s0 + $0x50] sm:$0xff]
  %v38 = vld [vmem:[%s0 + $0x58] sm:$0xff]
  %v39 = vld [vmem:[%s0 + $0x60] sm:$0xff]
  %v40 = vld [vmem:[%s0 + $0x68] sm:$0xff]
  %v41 = vld [vmem:[%s0 + $0x70] sm:$0xff]
  %v42 = vld [vmem:[%s0 + $0x78] sm:$0xff]
  %v43 = vld [vmem:[%s0 + $0x80] sm:$0xff]
  %v44 = vld [vmem:[%s0 + $0x88] sm:$0xff]
  %v45 = vld [vmem:[%s0 + $0x90] sm:$0xff]
  %v46 = vld [vmem:[%s0 + $0x98] sm:$0xff]
  %v47 = vld [vmem:[%s0 + $0xa0] sm:$0xff]
  %v48 = vld [vmem:[%s0 + $0xa8] sm:$0xff]
  %v49 = vld [vmem:[%s0 + $0xb0] sm:$0xff]
  %v50 = vld [vmem:[%s0 + $0xb8] sm:$0xff]
  %v51 = vld [vmem:[%s0 + $0xc0] sm:$0xff]
  %v52 = vpack.c.bf16 %v28, %v27
  %v53 = vpack.c.bf16 %v30, %v29
  %v54 = vpack.c.bf16 %v32, %v31
  %v55 = vpack.c.bf16 %v34, %v33
  %v56 = vpack.c.bf16 %v36, %v35
  %v57 = vpack.c.bf16 %v38, %v37
  %v58 = vpack.c.bf16 %v40, %v39
  %v59 = vpack.c.bf16 %v42, %v41
  %v60 = vpack.c.bf16 %v44, %v43
  %v61 = vpack.c.bf16 %v46, %v45
  %v62 = vpack.c.bf16 %v48, %v47
  %v63 = vpack.c.bf16 %v50, %v49
  %v64 = vpack.c.bf16 %v51, %v51
  %v65 = vld [vmem:[%s1] sm:$0xf]
  %v66 = vld [vmem:[%s1 + $0x4] sm:$0xf]
  %v67 = vld [vmem:[%s1 + $0x8] sm:$0xf]
  %v68 = vld [vmem:[%s2] sm:$0x1]
  %v70 = vperm.slane %v68, 0
  %v75 = vunpack.c.l.b16 %v65
  %v76 = vunpack.c.l.b16 %v66
  %v77 = vunpack.c.l.b16 %v67
  %v78 = vpack.c.b16 %v76, %v75
  %v79 = vpack.c.b16 %v77, %v77
  %vm81 = vcmask 195584
  %v83 = vsel %vm81, %v52, 0
  %v86 = vsel %vm81, %v53, 0
  %v89 = vsel %vm81, %v54, 0
  %v92 = vsel %vm81, %v55, 0
  %v95 = vsel %vm81, %v56, 0
  %v98 = vsel %vm81, %v57, 0
  %v101 = vsel %vm81, %v58, 0
  %v104 = vsel %vm81, %v59, 0
  %v107 = vsel %vm81, %v60, 0
  %v110 = vsel %vm81, %v61, 0
  %v113 = vsel %vm81, %v62, 0
  %v116 = vsel %vm81, %v63, 0
  %v119 = vsel %vm81, %v64, 0
  %vm121 = vcmask 1043456
  %v123 = vsel %vm121, %v79, 0
  %125 = vmatpush.bf16.msra.mxu0 0
  %126 = vmatpush.bf16.msra.mxu0 0
  %127 = vmatpush.bf16.msra.mxu0 0
  %128 = vmatpush.bf16.msra.mxu0 0
  %129 = vmatpush.bf16.msra.mxu0 0
  %130 = vmatpush.bf16.msra.mxu0 0
  %131 = vmatpush.bf16.msra.mxu0 %v123
  %132 = vmatpush.bf16.msra.mxu0 %v78
  %133 = vmatmul.bf16.gmra.mxu0 %v83
  %v134 = vpop.f32.mrf.mxu0
  %v135 = vadd.f32 %v70, %v134
  %v136 = vpop.f32.mrf.mxu0
  %v137 = vadd.f32 %v70, %v136
  %138 = vmatmul.bf16.gmra.mxu0 %v86
  %v139 = vpop.f32.mrf.mxu0
  %v140 = vadd.f32 %v70, %v139
  %v141 = vpop.f32.mrf.mxu0
  %v142 = vadd.f32 %v70, %v141
  %143 = vmatmul.bf16.gmra.mxu0 %v89
  %v144 = vpop.f32.mrf.mxu0
  %v145 = vadd.f32 %v70, %v144
  %v146 = vpop.f32.mrf.mxu0
  %v147 = vadd.f32 %v70, %v146
  %148 = vmatmul.bf16.gmra.mxu0 %v92
  %v149 = vpop.f32.mrf.mxu0
  %v150 = vadd.f32 %v70, %v149
  %v151 = vpop.f32.mrf.mxu0
  %v152 = vadd.f32 %v70, %v151
  %153 = vmatmul.bf16.gmra.mxu0 %v95
  %v154 = vpop.f32.mrf.mxu0
  %v155 = vadd.f32 %v70, %v154
  %v156 = vpop.f32.mrf.mxu0
  %v157 = vadd.f32 %v70, %v156
  %158 = vmatmul.bf16.gmra.mxu0 %v98
  %v159 = vpop.f32.mrf.mxu0
  %v160 = vadd.f32 %v70, %v159
  %v161 = vpop.f32.mrf.mxu0
  %v162 = vadd.f32 %v70, %v161
  %163 = vmatmul.bf16.gmra.mxu0 %v101
  %v164 = vpop.f32.mrf.mxu0
  %v165 = vadd.f32 %v70, %v164
  %v166 = vpop.f32.mrf.mxu0
  %v167 = vadd.f32 %v70, %v166
  %168 = vmatmul.bf16.gmra.mxu0 %v104
  %v169 = vpop.f32.mrf.mxu0
  %v170 = vadd.f32 %v70, %v169
  %v171 = vpop.f32.mrf.mxu0
  %v172 = vadd.f32 %v70, %v171
  %173 = vmatmul.bf16.gmra.mxu0 %v107
  %v174 = vpop.f32.mrf.mxu0
  %v175 = vadd.f32 %v70, %v174
  %v176 = vpop.f32.mrf.mxu0
  %v177 = vadd.f32 %v70, %v176
  %178 = vmatmul.bf16.gmra.mxu0 %v110
  %v179 = vpop.f32.mrf.mxu0
  %v180 = vadd.f32 %v70, %v179
  %v181 = vpop.f32.mrf.mxu0
  %v182 = vadd.f32 %v70, %v181
  %183 = vmatmul.bf16.gmra.mxu0 %v113
  %v184 = vpop.f32.mrf.mxu0
  %v185 = vadd.f32 %v70, %v184
  %v186 = vpop.f32.mrf.mxu0
  %v187 = vadd.f32 %v70, %v186
  %188 = vmatmul.bf16.gmra.mxu0 %v116
  %v189 = vpop.f32.mrf.mxu0
  %v190 = vadd.f32 %v70, %v189
  %v191 = vpop.f32.mrf.mxu0
  %v192 = vadd.f32 %v70, %v191
  %193 = vmatmul.bf16.gmra.mxu0 %v119
  %v194 = vpop.f32.mrf.mxu0
  %v195 = vadd.f32 %v70, %v194
  %v196 = vpop.f32.mrf.mxu0
  %197 = vdwg.mxu0
  %v198 = vmax.f32 %v135, 0.0
  %v199 = vmax.f32 %v137, 0.0
  %v200 = vmax.f32 %v140, 0.0
  %v201 = vmax.f32 %v142, 0.0
  %v202 = vmax.f32 %v145, 0.0
  %v203 = vmax.f32 %v147, 0.0
  %v204 = vmax.f32 %v150, 0.0
  %v205 = vmax.f32 %v152, 0.0
  %v206 = vmax.f32 %v155, 0.0
  %v207 = vmax.f32 %v157, 0.0
  %v208 = vmax.f32 %v160, 0.0
  %v209 = vmax.f32 %v162, 0.0
  %v210 = vmax.f32 %v165, 0.0
  %v211 = vmax.f32 %v167, 0.0
  %v212 = vmax.f32 %v170, 0.0
  %v213 = vmax.f32 %v172, 0.0
  %v214 = vmax.f32 %v175, 0.0
  %v215 = vmax.f32 %v177, 0.0
  %v216 = vmax.f32 %v180, 0.0
  %v217 = vmax.f32 %v182, 0.0
  %v218 = vmax.f32 %v185, 0.0
  %v219 = vmax.f32 %v187, 0.0
  %v220 = vmax.f32 %v190, 0.0
  %v221 = vmax.f32 %v192, 0.0
  %v222 = vmax.f32 %v195, 0.0
  %v223 = vpack.c.bf16 %v199, %v198
  %v224 = vpack.c.bf16 %v201, %v200
  %v225 = vpack.c.bf16 %v203, %v202
  %v226 = vpack.c.bf16 %v205, %v204
  %v227 = vpack.c.bf16 %v207, %v206
  %v228 = vpack.c.bf16 %v209, %v208
  %v229 = vpack.c.bf16 %v211, %v210
  %v230 = vpack.c.bf16 %v213, %v212
  %v231 = vpack.c.bf16 %v215, %v214
  %v232 = vpack.c.bf16 %v217, %v216
  %v233 = vpack.c.bf16 %v219, %v218
  %v234 = vpack.c.bf16 %v221, %v220
  %v235 = vpack.c.bf16 %v222, %v222
  %v236 = vld [vmem:[%s3] sm:$0xf]
  %v237 = vld [vmem:[%s3 + $0x4] sm:$0xf]
  %v238 = vld [vmem:[%s3 + $0x8] sm:$0xf]
  %v239 = vld [vmem:[%s3 + $0xc] sm:$0xf]
  %v240 = vld [vmem:[%s3 + $0x10] sm:$0xf]
  %v241 = vld [vmem:[%s3 + $0x14] sm:$0xf]
  %v242 = vld [vmem:[%s4] sm:$0x1]
  %v244 = vperm.slane %v242, 0
  %v252 = vunpack.c.l.b16 %v236
  %v253 = vunpack.c.l.b16 %v237
  %v254 = vunpack.c.l.b16 %v238
  %v255 = vunpack.c.l.b16 %v239
  %v256 = vunpack.c.l.b16 %v240
  %v257 = vunpack.c.l.b16 %v241
  %v258 = vpack.c.b16 %v253, %v252
  %v259 = vpack.c.b16 %v255, %v254
  %v260 = vpack.c.b16 %v257, %v256
  %vm264 = vcmask 392192
  %v266 = vsel %vm264, %v223, 0
  %v269 = vsel %vm264, %v224, 0
  %v272 = vsel %vm264, %v225, 0
  %v275 = vsel %vm264, %v226, 0
  %v278 = vsel %vm264, %v227, 0
  %v281 = vsel %vm264, %v228, 0
  %v284 = vsel %vm264, %v229, 0
  %v287 = vsel %vm264, %v230, 0
  %v290 = vsel %vm264, %v231, 0
  %v293 = vsel %vm264, %v232, 0
  %v296 = vsel %vm264, %v233, 0
  %v299 = vsel %vm264, %v234, 0
  %v302 = vsel %vm264, %v235, 0
  %304 = vmatpush.bf16.msra.mxu0 0
  %305 = vmatpush.bf16.msra.mxu0 0
  %306 = vmatpush.bf16.msra.mxu0 0
  %307 = vmatpush.bf16.msra.mxu0 0
  %308 = vmatpush.bf16.msra.mxu0 0
  %309 = vmatpush.bf16.msra.mxu0 %v260
  %310 = vmatpush.bf16.msra.mxu0 %v259
  %311 = vmatpush.bf16.msra.mxu0 %v258
  %312 = vmatmul.bf16.gmra.mxu0 %v266
  %v313 = vpop.f32.mrf.mxu0
  %v314 = vadd.f32 %v244, %v313
  %v315 = vpop.f32.mrf.mxu0
  %v316 = vadd.f32 %v244, %v315
  %317 = vmatmul.bf16.gmra.mxu0 %v269
  %v318 = vpop.f32.mrf.mxu0
  %v319 = vadd.f32 %v244, %v318
  %v320 = vpop.f32.mrf.mxu0
  %v321 = vadd.f32 %v244, %v320
  %322 = vmatmul.bf16.gmra.mxu0 %v272
  %v323 = vpop.f32.mrf.mxu0
  %v324 = vadd.f32 %v244, %v323
  %v325 = vpop.f32.mrf.mxu0
  %v326 = vadd.f32 %v244, %v325
  %327 = vmatmul.bf16.gmra.mxu0 %v275
  %v328 = vpop.f32.mrf.mxu0
  %v329 = vadd.f32 %v244, %v328
  %v330 = vpop.f32.mrf.mxu0
  %v331 = vadd.f32 %v244, %v330
  %332 = vmatmul.bf16.gmra.mxu0 %v278
  %v333 = vpop.f32.mrf.mxu0
  %v334 = vadd.f32 %v244, %v333
  %v335 = vpop.f32.mrf.mxu0
  %v336 = vadd.f32 %v244, %v335
  %337 = vmatmul.bf16.gmra.mxu0 %v281
  %v338 = vpop.f32.mrf.mxu0
  %v339 = vadd.f32 %v244, %v338
  %v340 = vpop.f32.mrf.mxu0
  %v341 = vadd.f32 %v244, %v340
  %342 = vmatmul.bf16.gmra.mxu0 %v284
  %v343 = vpop.f32.mrf.mxu0
  %v344 = vadd.f32 %v244, %v343
  %v345 = vpop.f32.mrf.mxu0
  %v346 = vadd.f32 %v244, %v345
  %347 = vmatmul.bf16.gmra.mxu0 %v287
  %v348 = vpop.f32.mrf.mxu0
  %v349 = vadd.f32 %v244, %v348
  %v350 = vpop.f32.mrf.mxu0
  %v351 = vadd.f32 %v244, %v350
  %352 = vmatmul.bf16.gmra.mxu0 %v290
  %v353 = vpop.f32.mrf.mxu0
  %v354 = vadd.f32 %v244, %v353
  %v355 = vpop.f32.mrf.mxu0
  %v356 = vadd.f32 %v244, %v355
  %357 = vmatmul.bf16.gmra.mxu0 %v293
  %v358 = vpop.f32.mrf.mxu0
  %v359 = vadd.f32 %v244, %v358
  %v360 = vpop.f32.mrf.mxu0
  %v361 = vadd.f32 %v244, %v360
  %362 = vmatmul.bf16.gmra.mxu0 %v296
  %v363 = vpop.f32.mrf.mxu0
  %v364 = vadd.f32 %v244, %v363
  %v365 = vpop.f32.mrf.mxu0
  %v366 = vadd.f32 %v244, %v365
  %367 = vmatmul.bf16.gmra.mxu0 %v299
  %v368 = vpop.f32.mrf.mxu0
  %v369 = vadd.f32 %v244, %v368
  %v370 = vpop.f32.mrf.mxu0
  %v371 = vadd.f32 %v244, %v370
  %372 = vmatmul.bf16.gmra.mxu0 %v302
  %v373 = vpop.f32.mrf.mxu0
  %v374 = vadd.f32 %v244, %v373
  %v375 = vpop.f32.mrf.mxu0
  %376 = vdwg.mxu0
  %v377 = vmax.f32 %v314, 0.0
  %v378 = vmax.f32 %v316, 0.0
  %v379 = vmax.f32 %v319, 0.0
  %v380 = vmax.f32 %v321, 0.0
  %v381 = vmax.f32 %v324, 0.0
  %v382 = vmax.f32 %v326, 0.0
  %v383 = vmax.f32 %v329, 0.0
  %v384 = vmax.f32 %v331, 0.0
  %v385 = vmax.f32 %v334, 0.0
  %v386 = vmax.f32 %v336, 0.0
  %v387 = vmax.f32 %v339, 0.0
  %v388 = vmax.f32 %v341, 0.0
  %v389 = vmax.f32 %v344, 0.0
  %v390 = vmax.f32 %v346, 0.0
  %v391 = vmax.f32 %v349, 0.0
  %v392 = vmax.f32 %v351, 0.0
  %v393 = vmax.f32 %v354, 0.0
  %v394 = vmax.f32 %v356, 0.0
  %v395 = vmax.f32 %v359, 0.0
  %v396 = vmax.f32 %v361, 0.0
  %v397 = vmax.f32 %v364, 0.0
  %v398 = vmax.f32 %v366, 0.0
  %v399 = vmax.f32 %v369, 0.0
  %v400 = vmax.f32 %v371, 0.0
  %v401 = vmax.f32 %v374, 0.0
  %v402 = vpack.c.bf16 %v378, %v377
  %v403 = vpack.c.bf16 %v380, %v379
  %v404 = vpack.c.bf16 %v382, %v381
  %v405 = vpack.c.bf16 %v384, %v383
  %v406 = vpack.c.bf16 %v386, %v385
  %v407 = vpack.c.bf16 %v388, %v387
  %v408 = vpack.c.bf16 %v390, %v389
  %v409 = vpack.c.bf16 %v392, %v391
  %v410 = vpack.c.bf16 %v394, %v393
  %v411 = vpack.c.bf16 %v396, %v395
  %v412 = vpack.c.bf16 %v398, %v397
  %v413 = vpack.c.bf16 %v400, %v399
  %v414 = vpack.c.bf16 %v401, %v401
  %v415 = vld [vmem:[%s5] sm:$0xf]
  %v416 = vld [vmem:[%s5 + $0x4] sm:$0xf]
  %v417 = vld [vmem:[%s5 + $0x8] sm:$0xf]
  %v418 = vld [vmem:[%s5 + $0xc] sm:$0xf]
  %v419 = vld [vmem:[%s5 + $0x10] sm:$0xf]
  %v420 = vld [vmem:[%s5 + $0x14] sm:$0xf]
  %v421 = vld [vmem:[%s6] sm:$0x1]
  %v423 = vperm.slane %v421, 0
  %v431 = vunpack.c.l.b16 %v415
  %v432 = vunpack.c.l.b16 %v416
  %v433 = vunpack.c.l.b16 %v417
  %v434 = vunpack.c.l.b16 %v418
  %v435 = vunpack.c.l.b16 %v419
  %v436 = vunpack.c.l.b16 %v420
  %v437 = vpack.c.b16 %v432, %v431
  %v438 = vpack.c.b16 %v434, %v433
  %v439 = vpack.c.b16 %v436, %v435
  %v444 = vsel %vm264, %v402, 0
  %v447 = vsel %vm264, %v403, 0
  %v450 = vsel %vm264, %v404, 0
  %v453 = vsel %vm264, %v405, 0
  %v456 = vsel %vm264, %v406, 0
  %v459 = vsel %vm264, %v407, 0
  %v462 = vsel %vm264, %v408, 0
  %v465 = vsel %vm264, %v409, 0
  %v468 = vsel %vm264, %v410, 0
  %v471 = vsel %vm264, %v411, 0
  %v474 = vsel %vm264, %v412, 0
  %v477 = vsel %vm264, %v413, 0
  %v480 = vsel %vm264, %v414, 0
  %482 = vmatpush.bf16.msra.mxu0 0
  %483 = vmatpush.bf16.msra.mxu0 0
  %484 = vmatpush.bf16.msra.mxu0 0
  %485 = vmatpush.bf16.msra.mxu0 0
  %486 = vmatpush.bf16.msra.mxu0 0
  %487 = vmatpush.bf16.msra.mxu0 %v439
  %488 = vmatpush.bf16.msra.mxu0 %v438
  %489 = vmatpush.bf16.msra.mxu0 %v437
  %490 = vmatmul.bf16.gmra.mxu0 %v444
  %v491 = vpop.f32.mrf.mxu0
  %v492 = vadd.f32 %v423, %v491
  %v493 = vpop.f32.mrf.mxu0
  %v494 = vadd.f32 %v423, %v493
  %495 = vmatmul.bf16.gmra.mxu0 %v447
  %v496 = vpop.f32.mrf.mxu0
  %v497 = vadd.f32 %v423, %v496
  %v498 = vpop.f32.mrf.mxu0
  %v499 = vadd.f32 %v423, %v498
  %500 = vmatmul.bf16.gmra.mxu0 %v450
  %v501 = vpop.f32.mrf.mxu0
  %v502 = vadd.f32 %v423, %v501
  %v503 = vpop.f32.mrf.mxu0
  %v504 = vadd.f32 %v423, %v503
  %505 = vmatmul.bf16.gmra.mxu0 %v453
  %v506 = vpop.f32.mrf.mxu0
  %v507 = vadd.f32 %v423, %v506
  %v508 = vpop.f32.mrf.mxu0
  %v509 = vadd.f32 %v423, %v508
  %510 = vmatmul.bf16.gmra.mxu0 %v456
  %v511 = vpop.f32.mrf.mxu0
  %v512 = vadd.f32 %v423, %v511
  %v513 = vpop.f32.mrf.mxu0
  %v514 = vadd.f32 %v423, %v513
  %515 = vmatmul.bf16.gmra.mxu0 %v459
  %v516 = vpop.f32.mrf.mxu0
  %v517 = vadd.f32 %v423, %v516
  %v518 = vpop.f32.mrf.mxu0
  %v519 = vadd.f32 %v423, %v518
  %520 = vmatmul.bf16.gmra.mxu0 %v462
  %v521 = vpop.f32.mrf.mxu0
  %v522 = vadd.f32 %v423, %v521
  %v523 = vpop.f32.mrf.mxu0
  %v524 = vadd.f32 %v423, %v523
  %525 = vmatmul.bf16.gmra.mxu0 %v465
  %v526 = vpop.f32.mrf.mxu0
  %v527 = vadd.f32 %v423, %v526
  %v528 = vpop.f32.mrf.mxu0
  %v529 = vadd.f32 %v423, %v528
  %530 = vmatmul.bf16.gmra.mxu0 %v468
  %v531 = vpop.f32.mrf.mxu0
  %v532 = vadd.f32 %v423, %v531
  %v533 = vpop.f32.mrf.mxu0
  %v534 = vadd.f32 %v423, %v533
  %535 = vmatmul.bf16.gmra.mxu0 %v471
  %v536 = vpop.f32.mrf.mxu0
  %v537 = vadd.f32 %v423, %v536
  %v538 = vpop.f32.mrf.mxu0
  %v539 = vadd.f32 %v423, %v538
  %540 = vmatmul.bf16.gmra.mxu0 %v474
  %v541 = vpop.f32.mrf.mxu0
  %v542 = vadd.f32 %v423, %v541
  %v543 = vpop.f32.mrf.mxu0
  %v544 = vadd.f32 %v423, %v543
  %545 = vmatmul.bf16.gmra.mxu0 %v477
  %v546 = vpop.f32.mrf.mxu0
  %v547 = vadd.f32 %v423, %v546
  %v548 = vpop.f32.mrf.mxu0
  %v549 = vadd.f32 %v423, %v548
  %550 = vmatmul.bf16.gmra.mxu0 %v480
  %v551 = vpop.f32.mrf.mxu0
  %v552 = vadd.f32 %v423, %v551
  %v553 = vpop.f32.mrf.mxu0
  %554 = vdwg.mxu0
  %v555 = vtanh.pop %v492
  %v556 = vtanh.pop %v494
  %v557 = vtanh.pop %v497
  %v558 = vtanh.pop %v499
  %v559 = vtanh.pop %v502
  %v560 = vtanh.pop %v504
  %v561 = vtanh.pop %v507
  %v562 = vtanh.pop %v509
  %v563 = vtanh.pop %v512
  %v564 = vtanh.pop %v514
  %v565 = vtanh.pop %v517
  %v566 = vtanh.pop %v519
  %v567 = vtanh.pop %v522
  %v568 = vtanh.pop %v524
  %v569 = vtanh.pop %v527
  %v570 = vtanh.pop %v529
  %v571 = vtanh.pop %v532
  %v572 = vtanh.pop %v534
  %v573 = vtanh.pop %v537
  %v574 = vtanh.pop %v539
  %v575 = vtanh.pop %v542
  %v576 = vtanh.pop %v544
  %v577 = vtanh.pop %v547
  %v578 = vtanh.pop %v549
  %v579 = vtanh.pop %v552
  %vm580 = vcmask 64512
  %581 = vst.msk [vmem:[%s7] sm:$0xff] %vm580, %v555
  %582 = vst.msk [vmem:[%s7 + $0x8] sm:$0xff] %vm580, %v556
  %583 = vst.msk [vmem:[%s7 + $0x10] sm:$0xff] %vm580, %v557
  %584 = vst.msk [vmem:[%s7 + $0x18] sm:$0xff] %vm580, %v558
  %585 = vst.msk [vmem:[%s7 + $0x20] sm:$0xff] %vm580, %v559
  %586 = vst.msk [vmem:[%s7 + $0x28] sm:$0xff] %vm580, %v560
  %587 = vst.msk [vmem:[%s7 + $0x30] sm:$0xff] %vm580, %v561
  %588 = vst.msk [vmem:[%s7 + $0x38] sm:$0xff] %vm580, %v562
  %589 = vst.msk [vmem:[%s7 + $0x40] sm:$0xff] %vm580, %v563
  %590 = vst.msk [vmem:[%s7 + $0x48] sm:$0xff] %vm580, %v564
  %591 = vst.msk [vmem:[%s7 + $0x50] sm:$0xff] %vm580, %v565
  %592 = vst.msk [vmem:[%s7 + $0x58] sm:$0xff] %vm580, %v566
  %593 = vst.msk [vmem:[%s7 + $0x60] sm:$0xff] %vm580, %v567
  %594 = vst.msk [vmem:[%s7 + $0x68] sm:$0xff] %vm580, %v568
  %595 = vst.msk [vmem:[%s7 + $0x70] sm:$0xff] %vm580, %v569
  %596 = vst.msk [vmem:[%s7 + $0x78] sm:$0xff] %vm580, %v570
  %597 = vst.msk [vmem:[%s7 + $0x80] sm:$0xff] %vm580, %v571
  %598 = vst.msk [vmem:[%s7 + $0x88] sm:$0xff] %vm580, %v572
  %599 = vst.msk [vmem:[%s7 + $0x90] sm:$0xff] %vm580, %v573
  %600 = vst.msk [vmem:[%s7 + $0x98] sm:$0xff] %vm580, %v574
  %601 = vst.msk [vmem:[%s7 + $0xa0] sm:$0xff] %vm580, %v575
  %602 = vst.msk [vmem:[%s7 + $0xa8] sm:$0xff] %vm580, %v576
  %603 = vst.msk [vmem:[%s7 + $0xb0] sm:$0xff] %vm580, %v577
  %604 = vst.msk [vmem:[%s7 + $0xb8] sm:$0xff] %vm580, %v578
  %605 = vst.msk [vmem:[%s7 + $0xc0] sm:$0xff] %vm580, %v579
  // Predicated region
  $region30: #{_ppo_actor_forward_jit.1} parent=0 // pred_check
    _
  $region31: #{_ppo_actor_forward_jit.1} parent=0 // pred_check_branch
    %607 = sbr.rel (0) target = $region33
  $region32: #{_ppo_actor_forward_jit.1} parent=0 // pred_region
    _
  $region33: #{_ppo_actor_forward_jit.1} parent=0 // pred_fallthru
    _
  // Predicated region
  $region34: #{_ppo_actor_forward_jit.1} parent=0 // pred_check
    _
  $region35: #{_ppo_actor_forward_jit.1} parent=0 // pred_check_branch
    %609 = sbr.rel (0) target = $region37
  $region36: #{_ppo_actor_forward_jit.1} parent=0 // pred_region
    _
  $region37: #{_ppo_actor_forward_jit.1} parent=0 // pred_fallthru
    _

</llo_original>
